<compile_context>
chip_gen: v6e
topology: v6e:2x2x1
jax: 0.10.0
libtpu: 0.0.40
codegen_flags: <defaults>
</compile_context>

<pallas_src>
import functools

import numpy as np
import jax
import jax.numpy as jnp
from jax import lax
from jax.experimental import pallas as pl
from jax.experimental.pallas import tpu as pltpu


# --------------------------------------------------------------------------
# Kernel: one (batch, spatial-tile) block per grid step.
#   x_ref : (C, S_tile, L)   channels stacked; spatial on (sublane, lane)
#   g_ref : (C, 1, L)        LayerNorm weight (lane-dense, resident)
#   b_ref : (C, 1, L)        LayerNorm bias
#   o_ref : (C, S_tile, L)
# --------------------------------------------------------------------------
def _layernorm_c_kernel(x_ref, g_ref, b_ref, o_ref, *, eps):
    x = x_ref[...].astype(jnp.float32)                    # (C, S, L)

    mean = jnp.mean(x, axis=0, keepdims=True)             # (1, S, L) VPU adds
    xc = x - mean
    var = jnp.mean(xc * xc, axis=0, keepdims=True)        # biased, like torch
    inv = lax.rsqrt(var + eps)                            # EUP slot

    y = xc * inv
    y = y * g_ref[...].astype(jnp.float32) + b_ref[...].astype(jnp.float32)

    o_ref[...] = y.astype(o_ref.dtype)


# --------------------------------------------------------------------------
# Tile picker: largest sublane-aligned S-tile whose double-buffered in+out
# footprint stays inside a conservative VMEM budget (fits v5e's 16 MiB default
# scoped VMEM and v7x's 32 MiB scoped limit), while guaranteeing >= 2 total
# grid steps for v7x's two TensorCores whenever the data allows a split.
# --------------------------------------------------------------------------
def _pick_s_tile(S, C, L, itemsize, *, batch=1,
                 vmem_budget_bytes=12 << 20, min_total_steps=2):
    sub_align = 8 * max(1, 4 // itemsize)           # 8 (f32), 16 (bf16), 32 (i8)
    row_bytes = C * max(L, 128) * itemsize          # bytes per unit of S (lane-padded)
    # 2 (double buffer) x 2 (input + output) blocks resident at once.
    max_rows = (vmem_budget_bytes // (4 * row_bytes)) // sub_align * sub_align
    max_rows = max(sub_align, max_rows)

    tile = S if S <= max_rows else max_rows         # full extent or 8-multiple

    # Ensure at least `min_total_steps` grid steps when the data is splittable.
    if batch * pl.cdiv(S, tile) < min_total_steps and S >= 2 * sub_align:
        want = -(-S // min_total_steps)             # ceil(S / steps)
        tile = max(sub_align, -(-want // sub_align) * sub_align)
    return tile


# --------------------------------------------------------------------------
# Wrapper.
# --------------------------------------------------------------------------
def layernorm_proxy(x, gamma, beta, *, eps=1e-5):
    B, C, H, W = x.shape
    HW = H * W

    # Layout selection:
    #  * W already a lane multiple      -> use native 4-D array (no reshape).
    #  * W < 128 but HW divisible by 128 -> pure reshape to (B, C, HW/128, 128)
    #    so loads/stores are lane-dense full vst's (biggest measured lever).
    #  * otherwise                      -> native 4-D (lane-masked but correct).
    if W % 128 != 0 and HW % 128 == 0:
        S, L = HW // 128, 128
        x4 = x.reshape(B, C, S, L)
    else:
        S, L = H, W
        x4 = x
    # TODO(synk): when neither W nor HW is a multiple of 128 the last dim stays
    # W and stores are lane-masked; correct, but suboptimal for tiny W.

    itemsize = jnp.dtype(x.dtype).itemsize
    s_tile = _pick_s_tile(S, C, L, itemsize, batch=B)
    n_tiles = pl.cdiv(S, s_tile)

    # Lane-dense resident parameter blocks (constant index map -> no re-DMA).
    g = jnp.broadcast_to(gamma.reshape(C, 1, 1), (C, 1, L))
    b = jnp.broadcast_to(beta.reshape(C, 1, 1), (C, 1, L))

    kernel = functools.partial(_layernorm_c_kernel, eps=eps)

    out = pl.pallas_call(
        kernel,
        out_shape=jax.ShapeDtypeStruct((B, C, S, L), x.dtype),
        grid_spec=pltpu.PrefetchScalarGridSpec(
            num_scalar_prefetch=0,
            grid=(B, n_tiles),
            in_specs=[
                pl.BlockSpec((pl.Squeezed(), C, s_tile, L),
                             lambda bi, ti: (bi, 0, ti, 0)),
                pl.BlockSpec((C, 1, L), lambda bi, ti: (0, 0, 0)),   # gamma
                pl.BlockSpec((C, 1, L), lambda bi, ti: (0, 0, 0)),   # beta
            ],
            out_specs=pl.BlockSpec((pl.Squeezed(), C, s_tile, L),
                                   lambda bi, ti: (bi, 0, ti, 0)),
        ),
        compiler_params=pltpu.CompilerParams(
            dimension_semantics=("parallel", "parallel")),
    )(x4, g, b)

    return out.reshape(B, C, H, W)


# --------------------------------------------------------------------------
# Pure-JAX reference (mirrors the PyTorch module exactly).
# --------------------------------------------------------------------------
def reference_forward(x, gamma, beta, *, eps=1e-5):
    xt = jnp.transpose(x, (0, 2, 3, 1))                  # b c h w -> b h w c
    mean = jnp.mean(xt, axis=-1, keepdims=True)
    var = jnp.mean((xt - mean) ** 2, axis=-1, keepdims=True)
    y = (xt - mean) / jnp.sqrt(var + eps)
    y = y * gamma + beta
    return jnp.transpose(y, (0, 3, 1, 2))                # b h w c -> b c h w


if __name__ == "__main__":
    key = jax.random.PRNGKey(0)
    k_x, k_g, k_b = jax.random.split(key, 3)

    B, C, H, W = 2, 4, 16, 16   # small shapes consistent with the module
    x = jax.random.normal(k_x, (B, C, H, W), jnp.float32)
    # nn.LayerNorm default init is gamma=1, beta=0; perturb slightly so the
    # affine path is actually exercised by the test.
    gamma = 1.0 + 0.1 * jax.random.normal(k_g, (C,), jnp.float32)
    beta = 0.1 * jax.random.normal(k_b, (C,), jnp.float32)

    out = layernorm_proxy(x, gamma, beta)
    out = jax.block_until_ready(out)

    ref = reference_forward(x, gamma, beta)
    np.testing.assert_allclose(np.asarray(out), np.asarray(ref),
                               rtol=1e-5, atol=1e-5)

    print("KERNEL_OK")
</pallas_src>

<mosaic_0001>
module attributes {stable_mosaic.version = 11 : i64} {
  func.func @_layernorm_c_kernel(%arg0: i32, %arg1: i32, %arg2: memref<1x4x2x128xf32, #tpu.memory_space<vmem>>, %arg3: memref<4x1x128xf32, #tpu.memory_space<vmem>>, %arg4: memref<4x1x128xf32, #tpu.memory_space<vmem>>, %arg5: memref<1x4x2x128xf32, #tpu.memory_space<vmem>>) attributes {dimension_semantics = [#tpu.dimension_semantics<parallel>, #tpu.dimension_semantics<parallel>], iteration_bounds = array<i64: 2, 1>, scalar_prefetch = 0 : i64, scratch_operands = 0 : i64, tpu.core_type = #tpu.core_type<tc>, window_params = [{transform_indices = @transform_0, window_bounds = array<i64: 1, 4, 2, 128>}, {pipeline_mode = #tpu.pipeline_mode<synchronous>, transform_indices = @transform_1, window_bounds = array<i64: 4, 1, 128>}, {pipeline_mode = #tpu.pipeline_mode<synchronous>, transform_indices = @transform_2, window_bounds = array<i64: 4, 1, 128>}, {transform_indices = @transform_3, window_bounds = array<i64: 1, 4, 2, 128>}]} {
    %c0 = arith.constant 0 : index
    %c0_0 = arith.constant 0 : index
    %c0_1 = arith.constant 0 : index
    %c0_2 = arith.constant 0 : index
    %0 = vector.load %arg2[%c0, %c0_0, %c0_1, %c0_2] : memref<1x4x2x128xf32, #tpu.memory_space<vmem>>, vector<1x4x2x128xf32>
    %1 = vector.shape_cast %0 : vector<1x4x2x128xf32> to vector<4x2x128xf32>
    %cst = arith.constant dense<0.000000e+00> : vector<2x128xf32>
    %2 = vector.multi_reduction <add>, %1, %cst [0] : vector<4x2x128xf32> to vector<2x128xf32>
    %3 = vector.shape_cast %2 : vector<2x128xf32> to vector<1x2x128xf32>
    %cst_3 = arith.constant 4.000000e+00 : f32
    %4 = vector.broadcast %cst_3 : f32 to vector<1x2x128xf32>
    %5 = arith.divf %3, %4 : vector<1x2x128xf32>
    %6 = vector.broadcast %5 : vector<1x2x128xf32> to vector<4x2x128xf32>
    %7 = arith.subf %1, %6 : vector<4x2x128xf32>
    %8 = arith.mulf %7, %7 : vector<4x2x128xf32>
    %cst_4 = arith.constant dense<0.000000e+00> : vector<2x128xf32>
    %9 = vector.multi_reduction <add>, %8, %cst_4 [0] : vector<4x2x128xf32> to vector<2x128xf32>
    %10 = vector.shape_cast %9 : vector<2x128xf32> to vector<1x2x128xf32>
    %cst_5 = arith.constant 4.000000e+00 : f32
    %11 = vector.broadcast %cst_5 : f32 to vector<1x2x128xf32>
    %12 = arith.divf %10, %11 : vector<1x2x128xf32>
    %cst_6 = arith.constant 9.99999974E-6 : f32
    %13 = vector.broadcast %cst_6 : f32 to vector<1x2x128xf32>
    %14 = arith.addf %12, %13 : vector<1x2x128xf32>
    %15 = math.rsqrt %14 : vector<1x2x128xf32>
    %16 = vector.broadcast %15 : vector<1x2x128xf32> to vector<4x2x128xf32>
    %17 = arith.mulf %7, %16 : vector<4x2x128xf32>
    %c0_7 = arith.constant 0 : index
    %c0_8 = arith.constant 0 : index
    %c0_9 = arith.constant 0 : index
    %18 = vector.load %arg3[%c0_7, %c0_8, %c0_9] : memref<4x1x128xf32, #tpu.memory_space<vmem>>, vector<4x1x128xf32>
    %19 = vector.broadcast %18 : vector<4x1x128xf32> to vector<4x2x128xf32>
    %20 = arith.mulf %17, %19 : vector<4x2x128xf32>
    %c0_10 = arith.constant 0 : index
    %c0_11 = arith.constant 0 : index
    %c0_12 = arith.constant 0 : index
    %21 = vector.load %arg4[%c0_10, %c0_11, %c0_12] : memref<4x1x128xf32, #tpu.memory_space<vmem>>, vector<4x1x128xf32>
    %22 = vector.broadcast %21 : vector<4x1x128xf32> to vector<4x2x128xf32>
    %23 = arith.addf %20, %22 : vector<4x2x128xf32>
    %c0_13 = arith.constant 0 : index
    %c0_14 = arith.constant 0 : index
    %c0_15 = arith.constant 0 : index
    %c0_16 = arith.constant 0 : index
    %24 = vector.load %arg5[%c0_13, %c0_14, %c0_15, %c0_16] : memref<1x4x2x128xf32, #tpu.memory_space<vmem>>, vector<1x4x2x128xf32>
    %25 = vector.shape_cast %24 : vector<1x4x2x128xf32> to vector<4x2x128xf32>
    %26 = vector.shape_cast %23 : vector<4x2x128xf32> to vector<1x4x2x128xf32>
    tpu.vector_store %arg5[%c0_13, %c0_14, %c0_15, %c0_16], %26 {strides = array<i32>} : memref<1x4x2x128xf32, #tpu.memory_space<vmem>>, vector<1x4x2x128xf32>,
    return
  }
  func.func @transform_0(%arg0: i32, %arg1: i32) -> (i32, i32, i32, i32) {
    %c0_i32 = arith.constant 0 : i32
    %c0_i32_0 = arith.constant 0 : i32
    %c0_i32_1 = arith.constant 0 : i32
    return %arg0, %c0_i32, %arg1, %c0_i32_0 : i32, i32, i32, i32
  }
  func.func @transform_1(%arg0: i32, %arg1: i32) -> (i32, i32, i32) {
    %c0_i32 = arith.constant 0 : i32
    %c0_i32_0 = arith.constant 0 : i32
    %c0_i32_1 = arith.constant 0 : i32
    %c0_i32_2 = arith.constant 0 : i32
    return %c0_i32, %c0_i32_0, %c0_i32_1 : i32, i32, i32
  }
  func.func @transform_2(%arg0: i32, %arg1: i32) -> (i32, i32, i32) {
    %c0_i32 = arith.constant 0 : i32
    %c0_i32_0 = arith.constant 0 : i32
    %c0_i32_1 = arith.constant 0 : i32
    %c0_i32_2 = arith.constant 0 : i32
    return %c0_i32, %c0_i32_0, %c0_i32_1 : i32, i32, i32
  }
  func.func @transform_3(%arg0: i32, %arg1: i32) -> (i32, i32, i32, i32) {
    %c0_i32 = arith.constant 0 : i32
    %c0_i32_0 = arith.constant 0 : i32
    %c0_i32_1 = arith.constant 0 : i32
    return %arg0, %c0_i32, %arg1, %c0_i32_0 : i32, i32, i32, i32
  }
}

</mosaic_0001>

<llo_original>
// kernel: tpu_custom_call.1
$region0: #{tpu_custom_call.1}
  #allocation0 [shape = 'u32[]', space=smem, size = 0x4, offset = 0x4, fixed_abs, tag = 'smem constant byte address 0x4 - core index']
  #allocation1 [shape = 'u32[144,128]{1,0:T(1,128)}', space=vmem, size = 0x12000, scoped, tag = 'internal scratch']
  %s0 = inlined_call_operand.hbm [shape: f32[2,4,2,128], index: 0, kind: input, shape index: {}]
  %s1 = inlined_call_operand.hbm [shape: f32[4,1,128], index: 1, kind: input, shape index: {}]
  %s2 = inlined_call_operand.hbm [shape: f32[4,1,128], index: 2, kind: input, shape index: {}]
  %s3 = inlined_call_operand.hbm [shape: f32[2,4,2,128], index: 3, kind: output, shape index: {}]
  %s4 = sld [smem:[#allocation0]]
  $region57: #{tpu_custom_call.1} parent=0
    _
  %s6 = ssub.s32 1, %s4
  %s7 = scalar_select 0, %s6, %s4
  $region1: #{tpu_custom_call.1} parent=0
    #allocation2 [shape = 'u8[8192]{0}', space=vmem, size = 0x2000, scoped, tag = 'input window, operand 0']
    #allocation3 [shape = 's32[2]{0}', space=sflag, size = 0x8, scoped, tag = 'scoped memory for tpu_custom_call.1']
    #allocation4 [shape = 's32[2]{0}', space=sflag, size = 0x8, scoped, tag = 'scoped memory for tpu_custom_call.1']
    #allocation5 [shape = 'u8[2048]{0}', space=vmem, size = 0x800, scoped, tag = 'input window, operand 1, single buffered']
    #allocation6 [shape = 's32[1]{0}', space=sflag, size = 0x4, scoped, tag = 'scoped memory for tpu_custom_call.1']
    #allocation7 [shape = 'u8[2048]{0}', space=vmem, size = 0x800, scoped, tag = 'input window, operand 2, single buffered']
    #allocation8 [shape = 'u8[8192]{0}', space=vmem, size = 0x2000, scoped, tag = 'output window, operand 0']
    %8 = vsyncpa [#allocation3], 0
    %s9 = scalar_lea.sflag [#allocation3], 1
    %10 = vsyncpa %s9, 0
    %11 = vsyncpa [#allocation6], 0
    %12 = vsyncpa [#allocation4], 0
    %s13 = scalar_lea.sflag [#allocation4], 1
    %14 = vsyncpa %s13, 0
    loop: start=0, step=1, limit=4
    $region2: #{tpu_custom_call.1} parent=1 // loop_pre_header
      _
    $region3: #{tpu_custom_call.1} parent=1 // loop_header
      %s16 = sphi 0, %s20
      %p17 = scmp.ge.s32.totalorder %s16, 4
      %s23 = sphi 0, %s35
      %s24 = sphi 0, %s31
      %s25 = sphi 0, %s23
      %s26 = sphi 0, %s24
      %s27 = sphi 0, %s25
      %s28 = sphi 0, %s26
      %s40 = sphi 0, %s42
      %s43 = sphi 0, %s40
      %s44 = sphi 0, %s43
      %s60 = sphi 0, %s44
      %s64 = sphi 0, %s64
      %s66 = sphi 0, %s64
      %s67 = sphi 0, %s66
      %s81 = sphi 0, %s67
      %s85 = sphi 0, %s85
      %s87 = sphi 0, %s85
      %s88 = sphi 0, %s87
      %s102 = sphi 0, %s88
      %s110 = sphi 0, %s112
      %s113 = sphi 0, %s110
      %s114 = sphi 0, %s113
      %s130 = sphi 0, %s114
    $region4: #{tpu_custom_call.1} parent=1 // loop_header_branch
      %19 = sbr.rel (%p17) target = $region8
    $region5: #{tpu_custom_call.1} parent=1 // loop_body
      %s21 = ssub.s32 %s16, 1
      %s22 = ssub.s32 %s16, 2
      %s29 = sadd.s32 1, %s24
      %p30 = scmp.ge.s32.totalorder %s29, 1
      %s31 = scalar_select %p30, 0, %s29
      %s32 = sadd.s32 1, %s23
      %s33 = scalar_select %p30, %s32, %s23
      %p34 = scmp.ge.s32.totalorder %s33, 2
      %s35 = scalar_select %p34, 0, %s33
      %s36 = ssub.s32 %s23, %s35
      %s37 = ssub.s32 %s24, %s31
      %s38 = sor.u32 %s36, %s37
      %p39 = scmp.eq.s32.totalorder %s38, 0
      %s41 = sadd.s32 %s40, 1
      %s42 = scalar_select %p39, %s40, %s41
      %p45 = pneg %p39
      %p46 = scmp.eq.s32.totalorder %s16, 1
      %p47 = por %p45, %p46
      %p48 = scmp.ne.s32.totalorder %s40, %s43
      %p49 = scmp.eq.s32.totalorder %s16, 0
      %p50 = por %p48, %p49
      %p51 = scmp.ne.s32.totalorder %s40, %s43
      %p52 = scmp.eq.s32.totalorder %s21, 1
      %p53 = por %p51, %p52
      %p54 = scmp.ne.s32.totalorder %s43, %s44
      %p55 = scmp.eq.s32.totalorder %s21, 0
      %p56 = por %p54, %p55
      %p57 = scmp.ne.s32.totalorder %s43, %s44
      %p58 = scmp.eq.s32.totalorder %s22, 1
      %p59 = por %p57, %p58
      %p61 = scmp.ne.s32.totalorder %s44, %s60
      %p62 = scmp.eq.s32.totalorder %s22, 0
      %p63 = por %p61, %p62
      %s65 = sadd.s32 %s64, 1
      %p68 = scmp.eq.s32.totalorder %s16, 1
      %p69 = scmp.ne.s32.totalorder %s64, %s66
      %p70 = scmp.eq.s32.totalorder %s16, 0
      %p71 = por %p69, %p70
      %p72 = scmp.ne.s32.totalorder %s64, %s66
      %p73 = scmp.eq.s32.totalorder %s21, 1
      %p74 = por %p72, %p73
      %p75 = scmp.ne.s32.totalorder %s66, %s67
      %p76 = scmp.eq.s32.totalorder %s21, 0
      %p77 = por %p75, %p76
      %p78 = scmp.ne.s32.totalorder %s66, %s67
      %p79 = scmp.eq.s32.totalorder %s22, 1
      %p80 = por %p78, %p79
      %p82 = scmp.ne.s32.totalorder %s67, %s81
      %p83 = scmp.eq.s32.totalorder %s22, 0
      %p84 = por %p82, %p83
      %s86 = sadd.s32 %s85, 1
      %p89 = scmp.eq.s32.totalorder %s16, 1
      %p90 = scmp.ne.s32.totalorder %s85, %s87
      %p91 = scmp.eq.s32.totalorder %s16, 0
      %p92 = por %p90, %p91
      %p93 = scmp.ne.s32.totalorder %s85, %s87
      %p94 = scmp.eq.s32.totalorder %s21, 1
      %p95 = por %p93, %p94
      %p96 = scmp.ne.s32.totalorder %s87, %s88
      %p97 = scmp.eq.s32.totalorder %s21, 0
      %p98 = por %p96, %p97
      %p99 = scmp.ne.s32.totalorder %s87, %s88
      %p100 = scmp.eq.s32.totalorder %s22, 1
      %p101 = por %p99, %p100
      %p103 = scmp.ne.s32.totalorder %s88, %s102
      %p104 = scmp.eq.s32.totalorder %s22, 0
      %p105 = por %p103, %p104
      %s106 = ssub.s32 %s23, %s35
      %s107 = ssub.s32 %s24, %s31
      %s108 = sor.u32 %s106, %s107
      %p109 = scmp.eq.s32.totalorder %s108, 0
      %s111 = sadd.s32 %s110, 1
      %s112 = scalar_select %p109, %s110, %s111
      %p115 = pneg %p109
      %p116 = scmp.eq.s32.totalorder %s16, 1
      %p117 = por %p115, %p116
      %p118 = scmp.ne.s32.totalorder %s110, %s113
      %p119 = scmp.eq.s32.totalorder %s16, 0
      %p120 = por %p118, %p119
      %p121 = scmp.ne.s32.totalorder %s110, %s113
      %p122 = scmp.eq.s32.totalorder %s21, 1
      %p123 = por %p121, %p122
      %p124 = scmp.ne.s32.totalorder %s113, %s114
      %p125 = scmp.eq.s32.totalorder %s21, 0
      %p126 = por %p124, %p125
      %p127 = scmp.ne.s32.totalorder %s113, %s114
      %p128 = scmp.eq.s32.totalorder %s22, 1
      %p129 = por %p127, %p128
      %p131 = scmp.ne.s32.totalorder %s114, %s130
      %p132 = scmp.eq.s32.totalorder %s22, 0
      %p133 = por %p131, %p132
      %p134 = scmp.le.s32.totalorder 1, %s16
      %p135 = scmp.lt.s32.totalorder %s16, 3
      %p136 = pnand %p134, %p135
      %p137 = pneg %p136
      // Predicated region
      $region9: #{tpu_custom_call.1} parent=5 // pred_check
        _
      $region10: #{tpu_custom_call.1} parent=5 // pred_check_branch
        %139 = sbr.rel (%p136) target = $region12
      $region11: #{tpu_custom_call.1} parent=5 // pred_region
        %s140 = ssub.s32 %s16, 1
        // Predicated region
        $region13: #{tpu_custom_call.1} parent=11 // pred_check
          %p141 = pneg %p77
        $region14: #{tpu_custom_call.1} parent=11 // pred_check_branch
          %143 = sbr.rel (%p141) target = $region16
        $region15: #{tpu_custom_call.1} parent=11 // pred_region
          %s145 = ssub.s32 64, 64
          %146 = vsyncadd [#allocation6], %s145
          %s147 = sshll.u32 [#allocation5], 4
          %s148 = int_to_ptr.vmem [resolvable:$true] %s147
          %153 = dma.hbm_to_vmem [thread:$0]  %s1, 64, %s148, [#allocation6], 16, 16, 1
        $region16: #{tpu_custom_call.1} parent=11 // pred_fallthru
          _
        // Predicated region
        $region17: #{tpu_custom_call.1} parent=11 // pred_check
          %p154 = pneg %p98
        $region18: #{tpu_custom_call.1} parent=11 // pred_check_branch
          %156 = sbr.rel (%p154) target = $region20
        $region19: #{tpu_custom_call.1} parent=11 // pred_region
          %s158 = ssub.s32 64, 64
          %159 = vsyncadd [#allocation6], %s158
          %s160 = sshll.u32 [#allocation7], 4
          %s161 = int_to_ptr.vmem [resolvable:$true] %s160
          %166 = dma.hbm_to_vmem [thread:$0]  %s2, 64, %s161, [#allocation6], 16, 16, 1
        $region20: #{tpu_custom_call.1} parent=11 // pred_fallthru
          _
      $region12: #{tpu_custom_call.1} parent=5 // pred_fallthru
        _
      %p167 = scmp.lt.s32.totalorder %s16, 2
      // Predicated region
      $region21: #{tpu_custom_call.1} parent=5 // pred_check
        %p168 = pneg %p167
      $region22: #{tpu_custom_call.1} parent=5 // pred_check_branch
        %170 = sbr.rel (%p168) target = $region24
      $region23: #{tpu_custom_call.1} parent=5 // pred_region
        // Predicated region
        $region25: #{tpu_custom_call.1} parent=23 // pred_check
          %p171 = pneg %p50
        $region26: #{tpu_custom_call.1} parent=23 // pred_check_branch
          %173 = sbr.rel (%p171) target = $region28
        $region27: #{tpu_custom_call.1} parent=23 // pred_region
          %s174 = sand.u32 %s40, 1
          %s175 = scalar_lea.sflag [#allocation3], %s174
          %s176 = sand.u32 %s40, 1
          %s177 = smul.addr %s176, 8
          %s178 = scalar_lea.vmem [#allocation2], %s177
          %s180 = ssub.s32 128, 128
          %181 = vsyncadd %s175, %s180
          %s182 = smul.addr %s23, 4
          %s183 = sadd.s32 %s24, %s182
          %s184 = smul.addr %s183, 32
          %s185 = scalar_lea.hbm %s0, %s184
          %s186 = sshll.u32 %s178, 4
          %s187 = int_to_ptr.vmem [resolvable:$true] %s186
          %192 = dma.hbm_to_vmem [thread:$0]  %s185, 128, %s187, %s175, 32, 32, 2
        $region28: #{tpu_custom_call.1} parent=23 // pred_fallthru
          _
      $region24: #{tpu_custom_call.1} parent=5 // pred_fallthru
        _
      %p193 = scmp.le.s32.totalorder 1, %s16
      %p194 = scmp.lt.s32.totalorder %s16, 3
      %p195 = pnand %p193, %p194
      %p196 = pneg %p195
      // Predicated region
      $region29: #{tpu_custom_call.1} parent=5 // pred_check
        _
      $region30: #{tpu_custom_call.1} parent=5 // pred_check_branch
        %198 = sbr.rel (%p195) target = $region32
      $region31: #{tpu_custom_call.1} parent=5 // pred_region
        %s199 = ssub.s32 %s16, 1
        %s200 = sand.u32 %s43, 1
        %s201 = scalar_lea.sflag [#allocation3], %s200
        %s202 = sand.u32 %s43, 1
        %s203 = smul.addr %s202, 8
        %s204 = scalar_lea.vmem [#allocation2], %s203
        // Predicated region
        $region33: #{tpu_custom_call.1} parent=31 // pred_check
          %p205 = pneg %p56
        $region34: #{tpu_custom_call.1} parent=31 // pred_check_branch
          %207 = sbr.rel (%p205) target = $region36
        $region35: #{tpu_custom_call.1} parent=31 // pred_region
          %208 = dma.done %s201, 128
        $region36: #{tpu_custom_call.1} parent=31 // pred_fallthru
          _
        // Predicated region
        $region37: #{tpu_custom_call.1} parent=31 // pred_check
          %p209 = pneg %p77
        $region38: #{tpu_custom_call.1} parent=31 // pred_check_branch
          %211 = sbr.rel (%p209) target = $region40
        $region39: #{tpu_custom_call.1} parent=31 // pred_region
          %212 = dma.done [#allocation6], 64
        $region40: #{tpu_custom_call.1} parent=31 // pred_fallthru
          _
        // Predicated region
        $region41: #{tpu_custom_call.1} parent=31 // pred_check
          %p213 = pneg %p98
        $region42: #{tpu_custom_call.1} parent=31 // pred_check_branch
          %215 = sbr.rel (%p213) target = $region44
        $region43: #{tpu_custom_call.1} parent=31 // pred_region
          %216 = dma.done [#allocation6], 64
        $region44: #{tpu_custom_call.1} parent=31 // pred_fallthru
          _
        %s217 = sand.u32 %s43, 1
        %s218 = scalar_lea.sflag [#allocation3], %s217
        %s219 = sand.u32 %s43, 1
        %s220 = smul.addr %s219, 8
        %s221 = scalar_lea.vmem [#allocation2], %s220
        %p222 = pneg %p56
        %p223 = pneg %p53
        %p224 = pneg %p77
        %p225 = pneg %p74
        %p226 = pneg %p98
        %p227 = pneg %p95
        %p228 = pneg %p126
        %p229 = pneg %p123
        %s230 = sand.u32 %s113, 1
        %s231 = scalar_lea.sflag [#allocation4], %s230
        %s232 = sand.u32 %s113, 1
        %s233 = smul.addr %s232, 8
        %s234 = scalar_lea.vmem [#allocation8], %s233
        %v235 = vld [vmem:[%s204] sm:$0x3]
        %v236 = vld [vmem:[%s204 + $0x2] sm:$0x3]
        %v237 = vld [vmem:[%s204 + $0x4] sm:$0x3]
        %v238 = vld [vmem:[%s204 + $0x6] sm:$0x3]
        %vm239 = vcmask 1041408
        %v240 = vsel %vm239, %v235, 0.0
        %v241 = vsel %vm239, %v236, 0.0
        %v242 = vadd.f32 %v240, %v241
        %v243 = vsel %vm239, %v237, 0.0
        %v244 = vadd.f32 %v242, %v243
        %v245 = vsel %vm239, %v238, 0.0
        %v246 = vadd.f32 %v244, %v245
        %v247 = vrcp.pop 4.0
        %v248 = vmul.f32 %v246, %v247
        %v249 = vsub.f32 %v235, %v248
        %v250 = vsub.f32 %v236, %v248
        %v251 = vsub.f32 %v237, %v248
        %v252 = vsub.f32 %v238, %v248
        %v253 = vmul.f32 %v249, %v249
        %v254 = vmul.f32 %v250, %v250
        %v255 = vmul.f32 %v251, %v251
        %v256 = vmul.f32 %v252, %v252
        %v257 = vsel %vm239, %v253, 0.0
        %v258 = vsel %vm239, %v254, 0.0
        %v259 = vadd.f32 %v257, %v258
        %v260 = vsel %vm239, %v255, 0.0
        %v261 = vadd.f32 %v259, %v260
        %v262 = vsel %vm239, %v256, 0.0
        %v263 = vadd.f32 %v261, %v262
        %v264 = vmul.f32 %v263, %v247
        %v265 = vadd.f32 %v264, 1e-05
        %v266 = vrsqrt.pop %v265
        %v267 = vmul.f32 %v249, %v266
        %v268 = vmul.f32 %v250, %v266
        %v269 = vmul.f32 %v251, %v266
        %v270 = vmul.f32 %v252, %v266
        %v271 = vld [vmem:[#allocation5] sm:$0x1]
        %v272 = vld [vmem:[#allocation5 + $0x1] sm:$0x1]
        %v273 = vld [vmem:[#allocation5 + $0x2] sm:$0x1]
        %v274 = vld [vmem:[#allocation5 + $0x3] sm:$0x1]
        %v279 = vlaneseq
        %v280 = vshrl.u32 %v279, 7
        %v281 = vsub.s32 0, %v280
        %v282 = vrot.slane %v271, %v281
        %v283 = vlaneseq
        %v284 = vshrl.u32 %v283, 7
        %v285 = vsub.s32 0, %v284
        %v286 = vrot.slane %v272, %v285
        %v287 = vlaneseq
        %v288 = vshrl.u32 %v287, 7
        %v289 = vsub.s32 0, %v288
        %v290 = vrot.slane %v273, %v289
        %v291 = vlaneseq
        %v292 = vshrl.u32 %v291, 7
        %v293 = vsub.s32 0, %v292
        %v294 = vrot.slane %v274, %v293
        %v299 = vmul.f32 %v267, %v282
        %v300 = vmul.f32 %v268, %v286
        %v301 = vmul.f32 %v269, %v290
        %v302 = vmul.f32 %v270, %v294
        %v303 = vld [vmem:[#allocation7] sm:$0x1]
        %v304 = vld [vmem:[#allocation7 + $0x1] sm:$0x1]
        %v305 = vld [vmem:[#allocation7 + $0x2] sm:$0x1]
        %v306 = vld [vmem:[#allocation7 + $0x3] sm:$0x1]
        %v311 = vlaneseq
        %v312 = vshrl.u32 %v311, 7
        %v313 = vsub.s32 0, %v312
        %v314 = vrot.slane %v303, %v313
        %v315 = vlaneseq
        %v316 = vshrl.u32 %v315, 7
        %v317 = vsub.s32 0, %v316
        %v318 = vrot.slane %v304, %v317
        %v319 = vlaneseq
        %v320 = vshrl.u32 %v319, 7
        %v321 = vsub.s32 0, %v320
        %v322 = vrot.slane %v305, %v321
        %v323 = vlaneseq
        %v324 = vshrl.u32 %v323, 7
        %v325 = vsub.s32 0, %v324
        %v326 = vrot.slane %v306, %v325
        %v331 = vadd.f32 %v299, %v314
        %v332 = vadd.f32 %v300, %v318
        %v333 = vadd.f32 %v301, %v322
        %v334 = vadd.f32 %v302, %v326
        %335 = vst [vmem:[%s234] sm:$0x3] %v331
        %336 = vst [vmem:[%s234 + $0x2] sm:$0x3] %v332
        %337 = vst [vmem:[%s234 + $0x4] sm:$0x3] %v333
        %338 = vst [vmem:[%s234 + $0x6] sm:$0x3] %v334
        %s339 = sand.u32 %s113, 1
        %s340 = scalar_lea.sflag [#allocation4], %s339
        %s341 = sand.u32 %s113, 1
        %s342 = smul.addr %s341, 8
        %s343 = scalar_lea.vmem [#allocation8], %s342
        // Predicated region
        $region45: #{tpu_custom_call.1} parent=31 // pred_check
          %p344 = pneg %p123
        $region46: #{tpu_custom_call.1} parent=31 // pred_check_branch
          %346 = sbr.rel (%p344) target = $region48
        $region47: #{tpu_custom_call.1} parent=31 // pred_region
          %s348 = ssub.s32 128, 128
          %349 = vsyncadd %s340, %s348
          %s350 = smul.addr %s25, 4
          %s351 = sadd.s32 %s26, %s350
          %s352 = smul.addr %s351, 32
          %s353 = scalar_lea.hbm %s3, %s352
          %s354 = sshll.u32 %s343, 4
          %s355 = int_to_ptr.vmem [resolvable:$true] %s354
          %360 = dma.vmem_to_hbm [thread:$0]  %s355, 128, %s353, %s340, 32, 32, 2
        $region48: #{tpu_custom_call.1} parent=31 // pred_fallthru
          _
      $region32: #{tpu_custom_call.1} parent=5 // pred_fallthru
        _
      %p361 = scmp.le.s32.totalorder 2, %s16
      // Predicated region
      $region49: #{tpu_custom_call.1} parent=5 // pred_check
        %p362 = pneg %p361
      $region50: #{tpu_custom_call.1} parent=5 // pred_check_branch
        %364 = sbr.rel (%p362) target = $region52
      $region51: #{tpu_custom_call.1} parent=5 // pred_region
        %s365 = ssub.s32 %s16, 2
        // Predicated region
        $region53: #{tpu_custom_call.1} parent=51 // pred_check
          %p366 = pneg %p129
        $region54: #{tpu_custom_call.1} parent=51 // pred_check_branch
          %368 = sbr.rel (%p366) target = $region56
        $region55: #{tpu_custom_call.1} parent=51 // pred_region
          %s369 = sand.u32 %s114, 1
          %s370 = scalar_lea.sflag [#allocation4], %s369
          %s371 = sand.u32 %s114, 1
          %s372 = smul.addr %s371, 8
          %s373 = scalar_lea.vmem [#allocation8], %s372
          %374 = dma.done %s370, 128
        $region56: #{tpu_custom_call.1} parent=51 // pred_fallthru
          _
      $region52: #{tpu_custom_call.1} parent=5 // pred_fallthru
        _
    $region6: #{tpu_custom_call.1} parent=1 // loop_footer
      %s20 = sadd.s32 1, %s16
    $region7: #{tpu_custom_call.1} parent=1 // loop_footer_branch
      %15 = sbr.rel target = $region3
    $region8: #{tpu_custom_call.1} parent=1 // loop_exit
      _
    %375 = vsyncpa [#allocation3], 1
    %s376 = scalar_lea.sflag [#allocation3], 1
    %377 = vsyncpa %s376, 1
    %378 = vsyncpa [#allocation6], 1
    %379 = vsyncpa [#allocation4], 1
    %s380 = scalar_lea.sflag [#allocation4], 1
    %381 = vsyncpa %s380, 1

</llo_original>
